<compile_context>
chip_gen: v5e
topology: v5e:2x2
jax: 0.10.0
libtpu: 0.0.40
codegen_flags: <defaults>
</compile_context>

<pallas_src>
import jax
import jax.numpy as jnp
from jax.experimental import pallas as pl
from jax.experimental.pallas import tpu as pltpu


_LANE = 128
_MAX_TILE_E = 2048  # lane-axis edge tile; ~2 MiB/step (double-buffered ~4 MiB) at D=128


def _round_up(x, m):
    return ((x + m - 1) // m) * m


def _train_kernel(z1s_ref, z1d_ref, vn_ref, noise_ref, out_ref):
    # vf[e] = sum_d z1[src_e, d] * z1[dst_e, d]; features on sublanes, edges on
    # lanes -> sublane reduction produces a lane-dense (1, T) row.
    vf = jnp.sum(z1s_ref[...] * z1d_ref[...], axis=0, keepdims=True)
    # Hard gumbel-softmax over logits [vf, 0]: first logit wins iff
    # vf + (g0 - g1) >= 0, with g0 - g1 ~ Logistic(0,1) (precomputed per edge).
    # tau > 0 rescales both perturbed logits equally -> argmax-invariant.
    flag = (vf + noise_ref[...] >= 0.0).astype(jnp.float32)
    out_ref[...] = flag * jax.nn.sigmoid(vf) + (1.0 - flag) * jax.nn.sigmoid(vn_ref[...])


def _eval_kernel(z1s_ref, z1d_ref, vn_ref, out_ref):
    vf = jnp.sum(z1s_ref[...] * z1d_ref[...], axis=0, keepdims=True)
    sf = jax.nn.sigmoid(vf)
    out_ref[...] = sf * sf + (1.0 - sf) * jax.nn.sigmoid(vn_ref[...])


def inner_product_decoder2(z1, z2, temp, edge_index, training=True, rng_key=None):
    """JAX/Pallas equivalent of InnerProductDecoder2.forward (forward pass only)."""
    del temp  # hard-gumbel forward value is tau-invariant (argmax unchanged)
    e = edge_index.shape[1]
    d = z1.shape[1]

    # Edge tile on the lane axis: multiple of 128, capped for VMEM headroom.
    if e >= _MAX_TILE_E:
        tile = _MAX_TILE_E
    else:
        tile = _round_up(max(e, _LANE), _LANE)
    e_pad = _round_up(e, tile)

    src = jnp.pad(edge_index[0], (0, e_pad - e))  # pad with node 0 (valid row)
    dst = jnp.pad(edge_index[1], (0, e_pad - e))

    # Gather + layout glue in plain JAX: edges land on the lane axis.
    z1_t = z1.astype(jnp.float32).T                       # (D, N)
    z1s = jnp.take(z1_t, src, axis=1)                     # (D, E_pad)
    z1d = jnp.take(z1_t, dst, axis=1)                     # (D, E_pad)
    z2c = z2[:, 0].astype(jnp.float32)
    vn = (jnp.take(z2c, src) + jnp.take(z2c, dst))[None, :]  # (1, E_pad) lane-dense

    grid = (e_pad // tile,)
    z1_spec = pl.BlockSpec((d, tile), lambda i: (0, i))
    row_spec = pl.BlockSpec((1, tile), lambda i: (0, i))
    out_shape = jax.ShapeDtypeStruct((1, e_pad), jnp.float32)
    cparams = pltpu.CompilerParams(dimension_semantics=("parallel",))

    if training:
        if rng_key is None:
            rng_key = jax.random.PRNGKey(0)
        # Difference of two iid Gumbel(0,1) draws is Logistic(0,1): one draw/edge.
        noise = jax.random.logistic(rng_key, (1, e_pad), dtype=jnp.float32)
        out = pl.pallas_call(
            _train_kernel,
            out_shape=out_shape,
            grid=grid,
            in_specs=[z1_spec, z1_spec, row_spec, row_spec],
            out_specs=row_spec,
            compiler_params=cparams,
        )(z1s, z1d, vn, noise)
    else:
        out = pl.pallas_call(
            _eval_kernel,
            out_shape=out_shape,
            grid=grid,
            in_specs=[z1_spec, z1_spec, row_spec],
            out_specs=row_spec,
            compiler_params=cparams,
        )(z1s, z1d, vn)

    return out[0, :e]


if __name__ == "__main__":
    key = jax.random.PRNGKey(0)
    k1, k2, k3, k4 = jax.random.split(key, 4)

    num_nodes, feat1, feat2, num_edges = 16, 32, 8, 64
    temp = 0.5

    z1 = jax.random.normal(k1, (num_nodes, feat1), dtype=jnp.float32)
    z2 = jax.random.normal(k2, (num_nodes, feat2), dtype=jnp.float32)
    edge_index = jax.random.randint(k3, (2, num_edges), 0, num_nodes, dtype=jnp.int32)

    out_train = inner_product_decoder2(z1, z2, temp, edge_index, training=True, rng_key=k4)
    out_eval = inner_product_decoder2(z1, z2, temp, edge_index, training=False)
    jax.block_until_ready((out_train, out_eval))

    # Pure-JAX reference.
    vf = jnp.sum(z1[edge_index[0]] * z1[edge_index[1]], axis=1)
    vn = z2[edge_index[0], 0] + z2[edge_index[1], 0]
    sf = jax.nn.sigmoid(vf)
    sn = jax.nn.sigmoid(vn)

    # Eval path is deterministic -> exact reference comparison.
    ref_eval = sf * sf + (1.0 - sf) * sn
    assert out_eval.shape == (num_edges,) and out_eval.dtype == jnp.float32
    assert jnp.max(jnp.abs(out_eval - ref_eval)) < 1e-5, "eval-path mismatch"

    # Training path: every edge output must be either sigmoid(vf) (flag==1)
    # or sigmoid(vn) (flag==0), depending on the sampled logistic noise.
    dist = jnp.minimum(jnp.abs(out_train - sf), jnp.abs(out_train - sn))
    assert jnp.max(dist) < 1e-5, "training-path output is not a valid hard blend"
    assert out_train.shape == (num_edges,) and out_train.dtype == jnp.float32

    print("KERNEL_OK")
</pallas_src>

<mosaic_0001>
module attributes {stable_mosaic.version = 11 : i64} {
  func.func @_train_kernel(%arg0: i32, %arg1: memref<32x128xf32, #tpu.memory_space<vmem>>, %arg2: memref<32x128xf32, #tpu.memory_space<vmem>>, %arg3: memref<1x128xf32, #tpu.memory_space<vmem>>, %arg4: memref<1x128xf32, #tpu.memory_space<vmem>>, %arg5: memref<1x128xf32, #tpu.memory_space<vmem>>) attributes {dimension_semantics = [#tpu.dimension_semantics<parallel>], iteration_bounds = array<i64: 1>, scalar_prefetch = 0 : i64, scratch_operands = 0 : i64, tpu.core_type = #tpu.core_type<tc>, window_params = [{transform_indices = @transform_0, window_bounds = array<i64: 32, 128>}, {transform_indices = @transform_1, window_bounds = array<i64: 32, 128>}, {transform_indices = @transform_2, window_bounds = array<i64: 1, 128>}, {transform_indices = @transform_3, window_bounds = array<i64: 1, 128>}, {transform_indices = @transform_4, window_bounds = array<i64: 1, 128>}]} {
    %c0 = arith.constant 0 : index
    %c0_0 = arith.constant 0 : index
    %0 = vector.load %arg1[%c0, %c0_0] : memref<32x128xf32, #tpu.memory_space<vmem>>, vector<32x128xf32>
    %c0_1 = arith.constant 0 : index
    %c0_2 = arith.constant 0 : index
    %1 = vector.load %arg2[%c0_1, %c0_2] : memref<32x128xf32, #tpu.memory_space<vmem>>, vector<32x128xf32>
    %2 = arith.mulf %0, %1 : vector<32x128xf32>
    %cst = arith.constant dense<0.000000e+00> : vector<128xf32>
    %3 = vector.multi_reduction <add>, %2, %cst [0] : vector<32x128xf32> to vector<128xf32>
    %4 = vector.shape_cast %3 : vector<128xf32> to vector<1x128xf32>
    %c0_3 = arith.constant 0 : index
    %c0_4 = arith.constant 0 : index
    %5 = vector.load %arg4[%c0_3, %c0_4] : memref<1x128xf32, #tpu.memory_space<vmem>>, vector<1x128xf32>
    %6 = arith.addf %4, %5 : vector<1x128xf32>
    %cst_5 = arith.constant 0.000000e+00 : f32
    %7 = vector.broadcast %cst_5 : f32 to vector<1x128xf32>
    %8 = arith.cmpf oge, %6, %7 : vector<1x128xf32>
    %9 = arith.extui %8 : vector<1x128xi1> to vector<1x128xi32>
    %10 = arith.sitofp %9 : vector<1x128xi32> to vector<1x128xf32>
    %11 = arith.negf %4 : vector<1x128xf32>
    %12 = math.exp %11 : vector<1x128xf32>
    %cst_6 = arith.constant 1.000000e+00 : f32
    %13 = vector.broadcast %cst_6 : f32 to vector<1x128xf32>
    %14 = arith.addf %13, %12 : vector<1x128xf32>
    %15 = arith.divf %13, %14 : vector<1x128xf32>
    %16 = arith.mulf %10, %15 : vector<1x128xf32>
    %cst_7 = arith.constant 1.000000e+00 : f32
    %17 = vector.broadcast %cst_7 : f32 to vector<1x128xf32>
    %18 = arith.subf %17, %10 : vector<1x128xf32>
    %c0_8 = arith.constant 0 : index
    %c0_9 = arith.constant 0 : index
    %19 = vector.load %arg3[%c0_8, %c0_9] : memref<1x128xf32, #tpu.memory_space<vmem>>, vector<1x128xf32>
    %20 = arith.negf %19 : vector<1x128xf32>
    %21 = math.exp %20 : vector<1x128xf32>
    %cst_10 = arith.constant 1.000000e+00 : f32
    %22 = vector.broadcast %cst_10 : f32 to vector<1x128xf32>
    %23 = arith.addf %22, %21 : vector<1x128xf32>
    %24 = arith.divf %22, %23 : vector<1x128xf32>
    %25 = arith.mulf %18, %24 : vector<1x128xf32>
    %26 = arith.addf %16, %25 : vector<1x128xf32>
    %c0_11 = arith.constant 0 : index
    %c0_12 = arith.constant 0 : index
    %27 = vector.load %arg5[%c0_11, %c0_12] : memref<1x128xf32, #tpu.memory_space<vmem>>, vector<1x128xf32>
    tpu.vector_store %arg5[%c0_11, %c0_12], %26 {strides = array<i32>} : memref<1x128xf32, #tpu.memory_space<vmem>>, vector<1x128xf32>,
    return
  }
  func.func @transform_0(%arg0: i32) -> (i32, i32) {
    %c0_i32 = arith.constant 0 : i32
    %c0_i32_0 = arith.constant 0 : i32
    return %c0_i32, %arg0 : i32, i32
  }
  func.func @transform_1(%arg0: i32) -> (i32, i32) {
    %c0_i32 = arith.constant 0 : i32
    %c0_i32_0 = arith.constant 0 : i32
    return %c0_i32, %arg0 : i32, i32
  }
  func.func @transform_2(%arg0: i32) -> (i32, i32) {
    %c0_i32 = arith.constant 0 : i32
    %c0_i32_0 = arith.constant 0 : i32
    return %c0_i32, %arg0 : i32, i32
  }
  func.func @transform_3(%arg0: i32) -> (i32, i32) {
    %c0_i32 = arith.constant 0 : i32
    %c0_i32_0 = arith.constant 0 : i32
    return %c0_i32, %arg0 : i32, i32
  }
  func.func @transform_4(%arg0: i32) -> (i32, i32) {
    %c0_i32 = arith.constant 0 : i32
    %c0_i32_0 = arith.constant 0 : i32
    return %c0_i32, %arg0 : i32, i32
  }
}

</mosaic_0001>

<llo_original>
// kernel: tpu_custom_call.1
$region0: #{tpu_custom_call.1}
  #allocation0 [shape = 'u32[]', space=smem, size = 0x4, offset = 0x4, fixed_abs, tag = 'smem constant byte address 0x4 - core index']
  #allocation1 [shape = 'u32[72,128]{1,0:T(1,128)}', space=vmem, size = 0x9000, scoped, tag = 'internal scratch']
  %s0 = inlined_call_operand.hbm [shape: f32[32,128], index: 0, kind: input, shape index: {}]
  %s1 = inlined_call_operand.hbm [shape: f32[32,128], index: 1, kind: input, shape index: {}]
  %s2 = inlined_call_operand.vmem [shape: f32[1,128], index: 2, kind: input, shape index: {}]
  %s3 = inlined_call_operand.vmem [shape: f32[1,128], index: 3, kind: input, shape index: {}]
  %s4 = inlined_call_operand.hbm [shape: f32[1,128], index: 4, kind: output, shape index: {}]
  %s5 = sld [smem:[#allocation0]]
  $region34: #{tpu_custom_call.1} parent=0
    _
  %s7 = ssub.s32 1, %s5
  %s8 = scalar_select 0, %s7, %s5
  $region1: #{tpu_custom_call.1} parent=0
    #allocation2 [shape = 'u8[16384]{0}', space=vmem, size = 0x4000, scoped, tag = 'input window, operand 0, single buffered']
    #allocation3 [shape = 's32[1]{0}', space=sflag, size = 0x4, scoped, tag = 'scoped memory for tpu_custom_call.1']
    #allocation4 [shape = 's32[1]{0}', space=sflag, size = 0x4, scoped, tag = 'scoped memory for tpu_custom_call.1']
    #allocation5 [shape = 'u8[16384]{0}', space=vmem, size = 0x4000, scoped, tag = 'input window, operand 1, single buffered']
    #allocation6 [shape = 's32[1]{0}', space=sflag, size = 0x4, scoped, tag = 'scoped memory for tpu_custom_call.1']
    #allocation7 [shape = 'u8[512]{0}', space=vmem, size = 0x400, scoped, tag = 'output window, operand 0, single buffered']
    %9 = vsyncpa [#allocation3], 0
    %10 = vsyncpa [#allocation6], 0
    %11 = vsyncpa [#allocation4], 0
    // Predicated region
    $region2: #{tpu_custom_call.1} parent=1 // pred_check
      _
    $region3: #{tpu_custom_call.1} parent=1 // pred_check_branch
      %13 = sbr.rel (0) target = $region5
    $region4: #{tpu_custom_call.1} parent=1 // pred_region
      %15 = vsyncadd [#allocation3], 0
      %s16 = sshll.u32 %s0, 4
      %s17 = int_to_ptr.hbm [resolvable:$true] %s16
      %s18 = sshll.u32 [#allocation2], 4
      %s19 = int_to_ptr.vmem [resolvable:$true] %s18
      %24 = dma.hbm_to_vmem [thread:$0]  %s17, 512, %s19, [#allocation3], 128, 128, 8
    $region5: #{tpu_custom_call.1} parent=1 // pred_fallthru
      _
    // Predicated region
    $region6: #{tpu_custom_call.1} parent=1 // pred_check
      _
    $region7: #{tpu_custom_call.1} parent=1 // pred_check_branch
      %26 = sbr.rel (0) target = $region9
    $region8: #{tpu_custom_call.1} parent=1 // pred_region
      %28 = vsyncadd [#allocation6], 0
      %s29 = sshll.u32 %s1, 4
      %s30 = int_to_ptr.hbm [resolvable:$true] %s29
      %s31 = sshll.u32 [#allocation5], 4
      %s32 = int_to_ptr.vmem [resolvable:$true] %s31
      %37 = dma.hbm_to_vmem [thread:$0]  %s30, 512, %s32, [#allocation6], 128, 128, 8
    $region9: #{tpu_custom_call.1} parent=1 // pred_fallthru
      _
    // Predicated region
    $region10: #{tpu_custom_call.1} parent=1 // pred_check
      _
    $region11: #{tpu_custom_call.1} parent=1 // pred_check_branch
      %39 = sbr.rel (0) target = $region13
    $region12: #{tpu_custom_call.1} parent=1 // pred_region
      _
    $region13: #{tpu_custom_call.1} parent=1 // pred_fallthru
      _
    // Predicated region
    $region14: #{tpu_custom_call.1} parent=1 // pred_check
      _
    $region15: #{tpu_custom_call.1} parent=1 // pred_check_branch
      %41 = sbr.rel (0) target = $region17
    $region16: #{tpu_custom_call.1} parent=1 // pred_region
      _
    $region17: #{tpu_custom_call.1} parent=1 // pred_fallthru
      _
    // Predicated region
    $region18: #{tpu_custom_call.1} parent=1 // pred_check
      _
    $region19: #{tpu_custom_call.1} parent=1 // pred_check_branch
      %43 = sbr.rel (0) target = $region21
    $region20: #{tpu_custom_call.1} parent=1 // pred_region
      %45 = dma.done [#allocation3], 512
    $region21: #{tpu_custom_call.1} parent=1 // pred_fallthru
      _
    // Predicated region
    $region22: #{tpu_custom_call.1} parent=1 // pred_check
      _
    $region23: #{tpu_custom_call.1} parent=1 // pred_check_branch
      %47 = sbr.rel (0) target = $region25
    $region24: #{tpu_custom_call.1} parent=1 // pred_region
      %49 = dma.done [#allocation6], 512
    $region25: #{tpu_custom_call.1} parent=1 // pred_fallthru
      _
    %v50 = vld [vmem:[#allocation2] sm:$0xff]
    %v51 = vld [vmem:[#allocation2 + $0x8] sm:$0xff]
    %v52 = vld [vmem:[#allocation2 + $0x10] sm:$0xff]
    %v53 = vld [vmem:[#allocation2 + $0x18] sm:$0xff]
    %v54 = vld [vmem:[#allocation5] sm:$0xff]
    %v55 = vld [vmem:[#allocation5 + $0x8] sm:$0xff]
    %v56 = vld [vmem:[#allocation5 + $0x10] sm:$0xff]
    %v57 = vld [vmem:[#allocation5 + $0x18] sm:$0xff]
    %v58 = vmul.f32 %v50, %v54
    %v59 = vmul.f32 %v51, %v55
    %v60 = vmul.f32 %v52, %v56
    %v61 = vmul.f32 %v53, %v57
    %v62 = vadd.f32 %v58, %v59
    %v63 = vadd.f32 %v62, %v60
    %v64 = vadd.f32 %v63, %v61
    %v65 = vrot.slane %v64, 4
    %v66 = vadd.f32 %v64, %v65
    %v67 = vrot.slane %v66, 2
    %v68 = vadd.f32 %v66, %v67
    %v69 = vrot.slane %v68, 1
    %v70 = vadd.f32 %v68, %v69
    %v71 = vld [vmem:[%s3] sm:$0x1]
    %v72 = vadd.f32 %v70, %v71
    %vm73 = vcmp.ge.f32.partialorder %v72, 0.0
    %v74 = vsel %vm73, 1, 0
    %v75 = vcvt.s32.f32 %v74
    %v76 = vxor.u32 %v70, 2147483648
    %v77 = vmul.f32 %v76, 1.442695
    %v78 = vpow.pop %v77
    %v79 = vadd.f32 %v78, 1.0
    %v80 = vrcp.pop %v79
    %v81 = vmul.f32 %v79, %v80
    %v82 = vsub.f32 1.0, %v81
    %v83 = vmul.f32 %v80, %v82
    %v84 = vadd.f32 %v80, %v83
    %vm85 = vweird.f32 %v79
    %vm86 = vweird.f32 %v80
    %vm87 = vmor %vm85, %vm86
    %v88 = vsel %vm87, %v80, %v84
    %v89 = vand.u32 2147483647, %v79
    %vm90 = vcmp.eq.f32.partialorder %v89, 8.507059e+37
    %v91 = vand.u32 %v79, 2147483648
    %v92 = vor.u32 1.1754944e-38, %v91
    %v93 = vsel %vm90, %v92, %v88
    %v94 = vmul.f32 1.0, %v93
    %v95 = vmul.f32 %v75, %v94
    %v96 = vsub.f32 1.0, %v75
    %v97 = vld [vmem:[%s2] sm:$0x1]
    %v98 = vxor.u32 %v97, 2147483648
    %v99 = vmul.f32 %v98, 1.442695
    %v100 = vpow.pop %v99
    %v101 = vadd.f32 %v100, 1.0
    %v102 = vrcp.pop %v101
    %v103 = vmul.f32 %v101, %v102
    %v104 = vsub.f32 1.0, %v103
    %v105 = vmul.f32 %v102, %v104
    %v106 = vadd.f32 %v102, %v105
    %vm107 = vweird.f32 %v101
    %vm108 = vweird.f32 %v102
    %vm109 = vmor %vm107, %vm108
    %v110 = vsel %vm109, %v102, %v106
    %v111 = vand.u32 2147483647, %v101
    %vm112 = vcmp.eq.f32.partialorder %v111, 8.507059e+37
    %v113 = vand.u32 %v101, 2147483648
    %v114 = vor.u32 1.1754944e-38, %v113
    %v115 = vsel %vm112, %v114, %v110
    %v116 = vmul.f32 1.0, %v115
    %v117 = vmul.f32 %v96, %v116
    %v118 = vadd.f32 %v95, %v117
    %119 = vst [vmem:[#allocation7] sm:$0x1] %v118
    // Predicated region
    $region26: #{tpu_custom_call.1} parent=1 // pred_check
      _
    $region27: #{tpu_custom_call.1} parent=1 // pred_check_branch
      %121 = sbr.rel (0) target = $region29
    $region28: #{tpu_custom_call.1} parent=1 // pred_region
      %123 = vsyncadd [#allocation4], 0
      %s125 = sshll.u32 [#allocation7], 4
      %s126 = int_to_ptr.vmem [resolvable:$true] %s125
      %s127 = sshll.u32 %s4, 4
      %s128 = int_to_ptr.hbm [resolvable:$true] %s127
      %130 = dma.vmem_to_hbm [thread:$0]  %s126, 16, %s128, [#allocation4]
    $region29: #{tpu_custom_call.1} parent=1 // pred_fallthru
      _
    // Predicated region
    $region30: #{tpu_custom_call.1} parent=1 // pred_check
      _
    $region31: #{tpu_custom_call.1} parent=1 // pred_check_branch
      %132 = sbr.rel (0) target = $region33
    $region32: #{tpu_custom_call.1} parent=1 // pred_region
      %134 = dma.done [#allocation4], 16
    $region33: #{tpu_custom_call.1} parent=1 // pred_fallthru
      _
    %135 = vsyncpa [#allocation3], 1
    %136 = vsyncpa [#allocation6], 1
    %137 = vsyncpa [#allocation4], 1

</llo_original>
